<compile_context>
chip_gen: v6e
topology: v6e:2x2x1
jax: 0.10.0
libtpu: 0.0.40
codegen_flags: <defaults>
</compile_context>

<pallas_src>
import math
from functools import partial

import jax
import jax.numpy as jnp
from jax import lax
from jax.experimental import pallas as pl
from jax.experimental.pallas import tpu as pltpu

C_PAD = 128          # lane-dense padded feature width
BN_EPS = 1e-5


def _vmem_limit_bytes():
    # generation-aware scoped-VMEM limit (~70% of physical: ~90 MiB on v5e/v6e, ~45 MiB on v7x)
    try:
        return int(0.7 * pltpu.get_tpu_info().vmem_capacity_bytes)
    except Exception:
        return 48 * 1024 * 1024


_VMEM_LIMIT = _vmem_limit_bytes()
_CPARAMS = pltpu.CompilerParams(vmem_limit_bytes=_VMEM_LIMIT)


def _vmem(n):
    return [pl.BlockSpec(memory_space=pltpu.MemorySpace.VMEM) for _ in range(n)]


def _pick_tk(n):
    """Source-axis tile for the message-passing reduction in gcn_block."""
    if n <= 1024:
        return n                       # single-block fast path (grid trip count 1)
    for tk in (1024, 512, 256, 128, 64, 32, 16):
        if n % tk == 0:
            return tk
    return n                           # TODO(synk): pad/mask for awkward very large N


# ----------------------------- in-kernel helpers -----------------------------

def _gcn_normalize(a_hat, symmetric):
    """Symmetric GCN normalization  a_norm[s,d] = deg[s]^-1/2 * a_hat[s,d] * deg[d]^-1/2,
    with deg[d] = sum_s a_hat[s,d] (PyG scatters edge weights over the target index).
    Row orientation of 1/sqrt(deg) via a sublane reduce; column orientation via a lane
    reduce when a_hat is symmetric (row sums == col sums), otherwise a ones-matvec."""
    dinv_row = lax.rsqrt(jnp.sum(a_hat, axis=0, keepdims=True))              # (1, n)
    if symmetric:
        dinv_col = lax.rsqrt(jnp.sum(a_hat, axis=1, keepdims=True))          # (n, 1)
    else:
        n = a_hat.shape[0]
        ones = jnp.ones((n, 1), jnp.float32)
        deg_col = lax.dot_general(a_hat, ones, (((0,), (0,)), ((), ())),
                                  preferred_element_type=jnp.float32)        # (n, 1)
        dinv_col = lax.rsqrt(deg_col)
    return a_hat * dinv_col * dinv_row


def _diag_mask(k):
    return (lax.broadcasted_iota(jnp.int32, (k, k), 0)
            == lax.broadcasted_iota(jnp.int32, (k, k), 1))


# ----------------------------- Pallas kernels -----------------------------

def _normalize_kernel(adj_ref, a_norm_ref, *, symmetric):
    """Level-0 GCN normalization with improved self loops (fill 2.0) added in-kernel.
    add_remaining_self_loops semantics: existing self-loop weights are kept."""
    a = adj_ref[...]
    diag = _diag_mask(a.shape[0])
    a_hat = jnp.where(jnp.logical_and(diag, a == 0.0), 2.0, a)
    a_norm_ref[...] = _gcn_normalize(a_hat, symmetric).astype(jnp.bfloat16)


def _pool_adj_kernel(*refs, symmetric):
    """Fused augment_adj + filter_adj + gcn_norm for one pooling level.

    Uses (A+I)^2 = A^2 + 2A + I restricted to the kept nodes:
        pooled[a,b] = (A @ A)[perm[a], perm[b]] + 2 * A[perm[a], perm[b]]   (off-diagonal)
    so the kernel only needs the gathered slabs of A (no (N,N) "A+I" temporary) and the
    tiny (k,k) gather A[perm, perm].  Diagonal is removed (remove_self_loops) for the
    carried adjacency and replaced by 2.0 (improved) for the normalized form.
    """
    if symmetric:
        rows_ref, app_ref, adj_ref, a_norm_ref = refs
        prod = lax.dot_general(rows_ref[...], rows_ref[...],          # rows @ rows^T
                               (((1,), (1,)), ((), ())),
                               preferred_element_type=jnp.float32)
    else:
        rows_ref, cols_ref, app_ref, adj_ref, a_norm_ref = refs
        prod = jnp.dot(rows_ref[...], cols_ref[...],
                       preferred_element_type=jnp.float32)
    pooled = prod + 2.0 * app_ref[...]
    diag = _diag_mask(pooled.shape[0])
    adj_ref[...] = jnp.where(diag, 0.0, pooled)                       # remove_self_loops
    a_norm_ref[...] = _gcn_normalize(jnp.where(diag, 2.0, pooled),    # improved self loops
                                     symmetric).astype(jnp.bfloat16)


def _gcn_block_kernel(a_norm_ref, x_ref, w_ref, b_ref, gamma_ref, beta_ref, *rest,
                      apply_relu, with_score):
    """Fused GCNConv(improved) + bias + (ReLU) + BatchNorm1d + (TopKPooling score).

    Grid axis 0 tiles the source-node (reduction) axis: each step computes the bf16 MXU
    product for one (TK, N) a_norm row-slab and one (TK, 128) x row-slab and accumulates
    into the resident (N, 128) output block.  bias/ReLU/BN/score run at the last step.
    """
    if with_score:
        pw_ref, x_out_ref, score_ref = rest
    else:
        (x_out_ref,) = rest

    k = pl.program_id(0)

    # feature transform for this slab of source nodes (bf16 MXU, f32 accumulation)
    xw = jnp.dot(x_ref[...].astype(jnp.bfloat16),
                 w_ref[...].astype(jnp.bfloat16),
                 preferred_element_type=jnp.float32)

    # message passing partial sum: h[d,:] += sum_{s in slab} a_norm[s,d] * xw[s,:]
    # contract axis 0 of both operands -> contiguous row-slab DMA, bf16 MXU, f32 acc.
    part = lax.dot_general(a_norm_ref[...],                 # already bf16 in HBM
                           xw.astype(jnp.bfloat16),
                           (((0,), (0,)), ((), ())),
                           preferred_element_type=jnp.float32)

    @pl.when(k == 0)
    def _():
        x_out_ref[...] = jnp.zeros_like(x_out_ref)

    x_out_ref[...] += part

    @pl.when(k == pl.num_programs(0) - 1)
    def _():
        h = x_out_ref[...] + b_ref[...]
        if apply_relu:
            h = jnp.maximum(h, 0.0)
        # BatchNorm1d, training-mode batch statistics (biased variance), eps = 1e-5
        mean = jnp.mean(h, axis=0, keepdims=True)
        var = jnp.mean(jnp.square(h - mean), axis=0, keepdims=True)
        out = (h - mean) * lax.rsqrt(var + BN_EPS) * gamma_ref[...] + beta_ref[...]
        x_out_ref[...] = out
        if with_score:
            # TopKPooling score: tanh(x . w / ||w||); pool_w pre-scaled by 1/||w|| host-side.
            s = jnp.sum(out * pw_ref[...], axis=-1, keepdims=True)    # (n, 1)
            score_ref[...] = jnp.tanh(s)


# ----------------------------- wrappers -----------------------------

def normalize_adj(adj, *, symmetric):
    n = adj.shape[0]
    return pl.pallas_call(
        partial(_normalize_kernel, symmetric=symmetric),
        out_shape=jax.ShapeDtypeStruct((n, n), jnp.bfloat16),
        in_specs=_vmem(1),
        out_specs=pl.BlockSpec(memory_space=pltpu.MemorySpace.VMEM),
        compiler_params=_CPARAMS,
    )(adj)


def pool_adj(rows, app, cols=None, *, symmetric):
    k = rows.shape[0]
    args = [rows] if symmetric else [rows, cols]
    args.append(app)
    return pl.pallas_call(
        partial(_pool_adj_kernel, symmetric=symmetric),
        out_shape=(jax.ShapeDtypeStruct((k, k), jnp.float32),    # carried adjacency
                   jax.ShapeDtypeStruct((k, k), jnp.bfloat16)),  # normalized (bf16 in HBM)
        in_specs=_vmem(len(args)),
        out_specs=(pl.BlockSpec(memory_space=pltpu.MemorySpace.VMEM),
                   pl.BlockSpec(memory_space=pltpu.MemorySpace.VMEM)),
        compiler_params=_CPARAMS,
    )(*args)


def gcn_block(a_norm, x, w, b, gamma, beta, pool_w=None, *, apply_relu=True):
    n = x.shape[0]
    tk = _pick_tk(n)
    k_steps = max(1, n // tk)
    with_score = pool_w is not None

    param_spec = pl.BlockSpec((1, C_PAD), lambda k: (0, 0))
    in_specs = [
        pl.BlockSpec((tk, n), lambda k: (k, 0)),          # a_norm row slab (bf16)
        pl.BlockSpec((tk, C_PAD), lambda k: (k, 0)),      # x row slab
        pl.BlockSpec((C_PAD, C_PAD), lambda k: (0, 0)),   # W (resident)
        param_spec, param_spec, param_spec,               # bias, gamma, beta
    ]
    args = [a_norm, x, w, b, gamma, beta]
    out_shapes = [jax.ShapeDtypeStruct((n, C_PAD), jnp.float32)]
    out_specs = [pl.BlockSpec((n, C_PAD), lambda k: (0, 0))]   # resident accumulator
    if with_score:
        args.append(pool_w)
        in_specs.append(param_spec)
        out_shapes.append(jax.ShapeDtypeStruct((n, 1), jnp.float32))
        out_specs.append(pl.BlockSpec((n, 1), lambda k: (0, 0)))

    kern = partial(_gcn_block_kernel, apply_relu=apply_relu, with_score=with_score)
    cparams = pltpu.CompilerParams(dimension_semantics=("arbitrary",),
                                   vmem_limit_bytes=_VMEM_LIMIT)
    res = pl.pallas_call(
        kern,
        grid=(k_steps,),
        out_shape=tuple(out_shapes) if with_score else out_shapes[0],
        in_specs=in_specs,
        out_specs=tuple(out_specs) if with_score else out_specs[0],
        compiler_params=cparams,
    )(*args)
    if with_score:
        x_out, score = res
        return x_out, score[:, 0]
    return res


# ----------------------------- parameters -----------------------------

def init_params(key, in_c, hid, out_c, depth):
    def glorot(k, shape):
        lim = math.sqrt(6.0 / (shape[0] + shape[1]))
        return jax.random.uniform(k, shape, jnp.float32, -lim, lim)

    def pad_w(w):
        return jnp.pad(w, ((0, C_PAD - w.shape[0]), (0, C_PAD - w.shape[1])))

    keys = iter(jax.random.split(key, 4 * depth + 8))
    zeros_b = jnp.zeros((1, C_PAD), jnp.float32)
    bn = (jnp.ones((1, C_PAD), jnp.float32), jnp.zeros((1, C_PAD), jnp.float32))

    p = {}
    # down convs: GCNBlock(depth=1) == single GCNConv
    p["down_w"] = [pad_w(glorot(next(keys), (in_c, hid)))]
    p["down_b"] = [zeros_b]
    for _ in range(depth):
        p["down_w"].append(pad_w(glorot(next(keys), (hid, hid))))
        p["down_b"].append(zeros_b)
    # TopKPooling projection weights, pre-scaled by 1/||w|| (hoisted out of the kernel)
    lim = 1.0 / math.sqrt(hid)
    p["pool_w"] = []
    for _ in range(depth):
        w = jax.random.uniform(next(keys), (1, hid), jnp.float32, -lim, lim)
        w = w / jnp.sqrt(jnp.sum(w * w))
        p["pool_w"].append(jnp.pad(w, ((0, 0), (0, C_PAD - hid))))
    # up convs (sum_res=True -> input channels == hid)
    p["up_w"], p["up_b"] = [], []
    for _ in range(depth - 1):
        p["up_w"].append(pad_w(glorot(next(keys), (hid, hid))))
        p["up_b"].append(zeros_b)
    p["up_w"].append(pad_w(glorot(next(keys), (hid, out_c))))
    p["up_b"].append(zeros_b)
    # BatchNorm1d params: weight=1, bias=0 (padded lanes stay 0 since beta pad = 0)
    p["down_bn"] = [bn for _ in range(depth + 1)]
    p["up_bn"] = [bn for _ in range(depth)]
    return p


# ----------------------------- forward -----------------------------

def hill_graph_unet_forward(x, edge_index, params, depth, pool_ratios, out_channels):
    n = x.shape[0]
    x = jnp.pad(x.astype(jnp.float32), ((0, 0), (0, C_PAD - x.shape[1])))
    # dense adjacency A[src, dst] = 1.0 (initial edge_weight = ones); no self loops.
    adj = jnp.zeros((n, n), jnp.float32).at[edge_index[0], edge_index[1]].set(1.0)
    # one host-side symmetry check: symmetric A => all pooled adjacencies stay symmetric,
    # enabling the single-slab pool_adj path and the lane-reduce degree (exact same math).
    symmetric = bool(jnp.array_equal(adj, adj.T))

    # level-0 GCN-normalized adjacency (improved self loops added in-kernel),
    # computed once, reused by down[0] and up[depth-1]
    a_norm = normalize_adj(adj, symmetric=symmetric)

    # fused: down_convs[0] -> ReLU -> BN -> pooling score for pools[0]
    x, score = gcn_block(a_norm, x, params["down_w"][0], params["down_b"][0],
                         *params["down_bn"][0], pool_w=params["pool_w"][0],
                         apply_relu=True)

    xs, a_norms, perms = [x], [a_norm], []
    for i in range(1, depth + 1):
        # TopKPooling node selection (data dependent -> plain JAX)
        k = int(math.ceil(pool_ratios[i - 1] * x.shape[0]))
        _, perm = lax.top_k(score, k)                 # descending score order
        # fused augment_adj + filter_adj + gcn_norm on the kept rows/cols only:
        # (A+I)^2 restricted to perm == A[perm,:]@A[:,perm] + 2*A[perm,perm] + I
        rows = adj[perm, :]                           # (k, n)
        app = rows[:, perm]                           # (k, k) == A[perm, perm]
        if symmetric:
            adj, a_norm = pool_adj(rows.astype(jnp.bfloat16), app, symmetric=True)
        else:
            cols = adj[:, perm].astype(jnp.bfloat16)
            adj, a_norm = pool_adj(rows.astype(jnp.bfloat16), app, cols, symmetric=False)
        x = x[perm] * score[perm][:, None]
        # fused down conv + ReLU + BN (+ next pooling score, if any)
        pw = params["pool_w"][i] if i < depth else None
        res = gcn_block(a_norm, x, params["down_w"][i], params["down_b"][i],
                        *params["down_bn"][i], pool_w=pw, apply_relu=True)
        if pw is None:
            x = res
        else:
            x, score = res
        if i < depth:
            xs.append(x)
            a_norms.append(a_norm)
        perms.append(perm)

    for i in range(depth):
        j = depth - 1 - i
        res, a_norm_j, perm = xs[j], a_norms[j], perms[j]
        up = jnp.zeros_like(res).at[perm].set(x)      # unpool scatter (plain JAX)
        x = gcn_block(a_norm_j, res + up, params["up_w"][i], params["up_b"][i],
                      *params["up_bn"][i], apply_relu=(i < depth - 1))
    return x[:, :out_channels]


# ----------------------------- main -----------------------------

if __name__ == "__main__":
    N, IN_C, HID, OUT_C, DEPTH = 16, 8, 16, 8, 2
    POOL_RATIOS = [0.5] * DEPTH

    key = jax.random.PRNGKey(0)
    kx, kp = jax.random.split(key)
    x = jax.random.normal(kx, (N, IN_C), jnp.float32)

    # deterministic symmetric graph: ring + skip-2 edges, both directions, no self loops
    src, dst = [], []
    for i in range(N):
        for d in (1, 2):
            jn = (i + d) % N
            src += [i, jn]
            dst += [jn, i]
    edge_index = jnp.array([src, dst], dtype=jnp.int32)      # (2, 64)

    params = init_params(kp, IN_C, HID, OUT_C, DEPTH)

    out = hill_graph_unet_forward(x, edge_index, params, DEPTH, POOL_RATIOS, OUT_C)
    out = jax.block_until_ready(out)

    assert out.shape == (N, OUT_C), out.shape
    assert bool(jnp.all(jnp.isfinite(out)))
    print("KERNEL_OK")
</pallas_src>

<mosaic_0001>
module attributes {stable_mosaic.version = 11 : i64} {
  func.func @_normalize_kernel(%arg0: memref<16x16xf32, #tpu.memory_space<vmem>>, %arg1: memref<16x16xbf16, #tpu.memory_space<vmem>>) attributes {dimension_semantics = [], scalar_prefetch = 0 : i64, scratch_operands = 0 : i64, tpu.core_type = #tpu.core_type<tc>} {
    %c0 = arith.constant 0 : index
    %c0_0 = arith.constant 0 : index
    %0 = vector.load %arg0[%c0, %c0_0] : memref<16x16xf32, #tpu.memory_space<vmem>>, vector<16x16xf32>
    %1 = tpu.iota {dimensions = array<i32: 0>} : vector<16x16xi32>
    %2 = tpu.iota {dimensions = array<i32: 1>} : vector<16x16xi32>
    %3 = arith.cmpi eq, %1, %2 : vector<16x16xi32>
    %cst = arith.constant 0.000000e+00 : f32
    %4 = vector.broadcast %cst : f32 to vector<16x16xf32>
    %5 = arith.cmpf oeq, %0, %4 : vector<16x16xf32>
    %6 = arith.andi %3, %5 : vector<16x16xi1>
    %cst_1 = arith.constant 2.000000e+00 : f32
    %7 = vector.broadcast %cst_1 : f32 to vector<16x16xf32>
    %8 = arith.select %6, %7, %0 : vector<16x16xi1>, vector<16x16xf32>
    %cst_2 = arith.constant dense<0.000000e+00> : vector<16xf32>
    %9 = vector.multi_reduction <add>, %8, %cst_2 [0] : vector<16x16xf32> to vector<16xf32>
    %10 = vector.shape_cast %9 : vector<16xf32> to vector<1x16xf32>
    %11 = math.rsqrt %10 : vector<1x16xf32>
    %cst_3 = arith.constant dense<0.000000e+00> : vector<16xf32>
    %12 = vector.multi_reduction <add>, %8, %cst_3 [1] : vector<16x16xf32> to vector<16xf32>
    %13 = vector.shape_cast %12 : vector<16xf32> to vector<16x1xf32>
    %14 = math.rsqrt %13 : vector<16x1xf32>
    %15 = vector.broadcast %14 : vector<16x1xf32> to vector<16x16xf32>
    %16 = arith.mulf %8, %15 : vector<16x16xf32>
    %17 = vector.broadcast %11 : vector<1x16xf32> to vector<16x16xf32>
    %18 = arith.mulf %16, %17 : vector<16x16xf32>
    %19 = arith.truncf %18 : vector<16x16xf32> to vector<16x16xbf16>
    %c0_4 = arith.constant 0 : index
    %c0_5 = arith.constant 0 : index
    %20 = vector.load %arg1[%c0_4, %c0_5] : memref<16x16xbf16, #tpu.memory_space<vmem>>, vector<16x16xbf16>
    tpu.vector_store %arg1[%c0_4, %c0_5], %19 {strides = array<i32>} : memref<16x16xbf16, #tpu.memory_space<vmem>>, vector<16x16xbf16>,
    return
  }
}

</mosaic_0001>

<llo_original>
// kernel: tpu_custom_call.1
$region0: #{tpu_custom_call.1}
  #allocation0 [shape = 'u32[]', space=smem, size = 0x4, offset = 0x4, fixed_abs, tag = 'smem constant byte address 0x4 - core index']
  #allocation1 [shape = 'u32[144,128]{1,0:T(1,128)}', space=vmem, size = 0x12000, scoped, tag = 'internal scratch']
  %s0 = inlined_call_operand.hbm [shape: f32[16,16], index: 0, kind: input, shape index: {}]
  %s1 = inlined_call_operand.hbm [shape: bf16[16,16], index: 1, kind: output, shape index: {}]
  %s2 = sld [smem:[#allocation0]]
  $region18: #{tpu_custom_call.1} parent=0
    _
  %s4 = ssub.s32 1, %s2
  %s5 = scalar_select 0, %s4, %s2
  $region1: #{tpu_custom_call.1} parent=0
    #allocation2 [shape = 'u8[8192]{0}', space=vmem, size = 0x2000, scoped, tag = 'input window, operand 0, single buffered']
    #allocation3 [shape = 's32[1]{0}', space=sflag, size = 0x4, scoped, tag = 'scoped memory for tpu_custom_call.1']
    #allocation4 [shape = 's32[1]{0}', space=sflag, size = 0x4, scoped, tag = 'scoped memory for tpu_custom_call.1']
    #allocation5 [shape = 'u8[4096]{0}', space=vmem, size = 0x1000, scoped, tag = 'output window, operand 0, single buffered']
    %6 = vsyncpa [#allocation3], 0
    %7 = vsyncpa [#allocation4], 0
    // Predicated region
    $region2: #{tpu_custom_call.1} parent=1 // pred_check
      _
    $region3: #{tpu_custom_call.1} parent=1 // pred_check_branch
      %9 = sbr.rel (0) target = $region5
    $region4: #{tpu_custom_call.1} parent=1 // pred_region
      %s11 = ssub.s32 256, 256
      %12 = vsyncadd [#allocation3], %s11
      %s13 = sshll.u32 [#allocation2], 4
      %s14 = int_to_ptr.vmem [resolvable:$true] %s13
      %19 = dma.hbm_to_vmem [thread:$0]  %s0, 256, %s14, [#allocation3], 128, 128, 8
    $region5: #{tpu_custom_call.1} parent=1 // pred_fallthru
      _
    // Predicated region
    $region6: #{tpu_custom_call.1} parent=1 // pred_check
      _
    $region7: #{tpu_custom_call.1} parent=1 // pred_check_branch
      %21 = sbr.rel (0) target = $region9
    $region8: #{tpu_custom_call.1} parent=1 // pred_region
      %22 = dma.done [#allocation3], 256
    $region9: #{tpu_custom_call.1} parent=1 // pred_fallthru
      _
    %v23 = vld [vmem:[#allocation2] sm:$0xff]
    %v24 = vld [vmem:[#allocation2 + $0x8] sm:$0xff]
    %v25 = vlaneseq
    %v26 = vshrl.u32 %v25, 7
    %v27 = vadd.s32 %v26, 8
    %v28 = vlaneseq
    %v29 = vand.u32 %v28, 127
    %vm30 = vcmp.eq.s32.totalorder %v26, %v29
    %vm31 = vcmp.eq.s32.totalorder %v27, %v29
    %vm32 = vcmp.eq.f32.partialorder %v23, 0.0
    %vm33 = vcmp.eq.f32.partialorder %v24, 0.0
    %vm34 = vmand %vm30, %vm32
    %vm35 = vmand %vm31, %vm33
    %v36 = vsel %vm34, 2.0, %v23
    %v37 = vsel %vm35, 2.0, %v24
    %vm38 = vcmask 130048
    %v39 = vsel %vm38, %v36, 0.0
    %v40 = vsel %vm38, %v37, 0.0
    %v41 = vadd.f32 %v39, %v40
    %v42 = vrot.slane %v41, 4
    %v43 = vadd.f32 %v41, %v42
    %v44 = vrot.slane %v43, 2
    %v45 = vadd.f32 %v43, %v44
    %v46 = vrot.slane %v45, 1
    %v47 = vadd.f32 %v45, %v46
    %v48 = vrsqrt.pop %v47
    %49 = vadd.xlane.f32.xlu0 %v39
    %v50 = vpop.xlane.xlu0 %49
    %51 = vadd.xlane.f32.xlu0 %v40
    %v52 = vpop.xlane.xlu0 %51
    %v53 = vrsqrt.pop %v50
    %v54 = vrsqrt.pop %v52
    %v55 = vmul.f32 %v36, %v53
    %v56 = vmul.f32 %v37, %v54
    %v57 = vmul.f32 %v55, %v48
    %v58 = vmul.f32 %v56, %v48
    %v59 = vpack.c.bf16 %v58, %v57
    %v61 = vunpack.c.l.b16 %v59
    %v62 = vunpack.c.h.b16 %v59
    %v63 = vpack.c.b16 %v61, %v61
    %v64 = vpack.c.b16 %v62, %v62
    %vm67 = vcmask 125952
    %68 = vst.msk [vmem:[#allocation5] sm:$0xf] %vm67, %v63
    %69 = vst.msk [vmem:[#allocation5 + $0x4] sm:$0xf] %vm67, %v64
    // Predicated region
    $region10: #{tpu_custom_call.1} parent=1 // pred_check
      _
    $region11: #{tpu_custom_call.1} parent=1 // pred_check_branch
      %71 = sbr.rel (0) target = $region13
    $region12: #{tpu_custom_call.1} parent=1 // pred_region
      %s73 = ssub.s32 128, 128
      %74 = vsyncadd [#allocation4], %s73
      %s75 = sshll.u32 [#allocation5], 4
      %s76 = int_to_ptr.vmem [resolvable:$true] %s75
      %81 = dma.vmem_to_hbm [thread:$0]  %s76, 128, %s1, [#allocation4], 64, 64, 4
    $region13: #{tpu_custom_call.1} parent=1 // pred_fallthru
      _
    // Predicated region
    $region14: #{tpu_custom_call.1} parent=1 // pred_check
      _
    $region15: #{tpu_custom_call.1} parent=1 // pred_check_branch
      %83 = sbr.rel (0) target = $region17
    $region16: #{tpu_custom_call.1} parent=1 // pred_region
      %84 = dma.done [#allocation4], 128
    $region17: #{tpu_custom_call.1} parent=1 // pred_fallthru
      _
    %85 = vsyncpa [#allocation3], 1
    %86 = vsyncpa [#allocation4], 1

</llo_original>
